<compile_context>
chip_gen: v7x
topology: tpu7x:2x2x1
jax: 0.10.0
libtpu: 0.0.40
codegen_flags: <defaults>
</compile_context>

<pallas_src>
import functools

import numpy as np
import jax
import jax.numpy as jnp
from jax import lax
from jax.experimental import pallas as pl
from jax.experimental.pallas import tpu as pltpu


def _round_up(x, n):
    return ((x + n - 1) // n) * n


def _arc_margin_kernel(label_ref, xn_ref, w_ref, o_ref, *,
                       s, cos_m, sin_m, th, mm, tc):
    # label_ref: (B, 1)  int32  (resident across class tiles)
    # xn_ref:    (B, D)  f32    pre-normalized input (resident)
    # w_ref:     (TC, D) weight class tile, native dtype (bf16 or f32)
    # o_ref:     (B, TC) f32 output tile
    w = w_ref[...]
    wf = w.astype(jnp.float32)

    # F.normalize(dim=1, eps=1e-12): v / max(||v||, eps) == v * rsqrt(max(ss, eps^2))
    sumsq = jnp.sum(wf * wf, axis=-1, keepdims=True)
    w_n = wf * lax.rsqrt(jnp.maximum(sumsq, 1e-24))

    # cosine = x_norm @ w_norm.T via NT contraction (no materialized transpose),
    # operands in the weight's native dtype, f32 accumulation on the MXU.
    dot_dtype = w.dtype
    cosine = lax.dot_general(
        xn_ref[...].astype(dot_dtype), w_n.astype(dot_dtype),
        dimension_numbers=(((1,), (1,)), ((), ())),
        preferred_element_type=jnp.float32)

    # sine = sqrt(clamp(1 - cos^2, 0, 1));  phi = cos(theta + m)
    sine = jnp.sqrt(jnp.clip(1.0 - cosine * cosine, 0.0, 1.0))
    phi = cosine * cos_m - sine * sin_m
    phi = jnp.where(cosine > th, phi, cosine - mm)

    # one-hot * phi + (1-one_hot) * cosine  ->  single compare + select
    cls_off = pl.program_id(0) * tc
    cls_idx = cls_off + lax.broadcasted_iota(jnp.int32, cosine.shape, 1)
    o_ref[...] = jnp.where(cls_idx == label_ref[...], phi, cosine) * s


def arc_margin_forward(x, weight, label, *, s=64.0, m=0.9, tc=1024):
    """ArcFace margin product forward.

    x:      (B, in_features)            float (f32 or bf16)
    weight: (out_features, in_features) float (streamed in its native dtype)
    label:  (B,)                        int
    returns (B, out_features) float32
    """
    B, D = x.shape
    C, D2 = weight.shape
    assert D == D2

    cos_m = float(np.cos(m))
    sin_m = float(np.sin(m))
    th = float(np.cos(np.pi - m))
    mm = float(np.sin(np.pi - m) * m)

    # Hoist the tile-invariant x normalization out of the per-tile kernel body.
    xf = x.astype(jnp.float32)
    xn = xf * lax.rsqrt(
        jnp.maximum(jnp.sum(xf * xf, axis=-1, keepdims=True), 1e-24))

    label2d = label.astype(jnp.int32).reshape(B, 1)

    # Class-tile sizing: big tile (amortize per-grid-step overhead, wide
    # unmasked lane-dense output stores), clamped so double-buffered weight
    # tile + double-buffered output tile fit comfortably in scoped VMEM.
    w_bytes = jnp.dtype(weight.dtype).itemsize
    tc_eff = min(tc, _round_up(C, 128))
    vmem_budget = 20 * 1024 * 1024
    while tc_eff > 128 and (2 * tc_eff * D * w_bytes + 2 * B * tc_eff * 4) > vmem_budget:
        tc_eff -= 128

    # Pad out_features up to a multiple of the tile (zero rows normalize to 0
    # -> cosine 0; padded columns sliced off below).
    C_pad = _round_up(C, tc_eff)
    if C_pad != C:
        weight = jnp.pad(weight, ((0, C_pad - C), (0, 0)))

    kernel = functools.partial(
        _arc_margin_kernel, s=float(s),
        cos_m=cos_m, sin_m=sin_m, th=th, mm=mm, tc=tc_eff)

    out = pl.pallas_call(
        kernel,
        out_shape=jax.ShapeDtypeStruct((B, C_pad), jnp.float32),
        grid=(C_pad // tc_eff,),
        in_specs=[
            pl.BlockSpec((B, 1), lambda j: (0, 0)),        # labels (resident)
            pl.BlockSpec((B, D), lambda j: (0, 0)),        # x_norm (resident)
            pl.BlockSpec((tc_eff, D), lambda j: (j, 0)),   # weight class tile
        ],
        out_specs=pl.BlockSpec((B, tc_eff), lambda j: (0, j)),
        compiler_params=pltpu.CompilerParams(
            dimension_semantics=("parallel",),             # megacore sharding
            vmem_limit_bytes=32 * 1024 * 1024),
    )(label2d, xn, weight)

    return out[:, :C] if C_pad != C else out


def _reference(x, weight, label, s=64.0, m=0.9):
    cos_m, sin_m = np.cos(m), np.sin(m)
    th, mm = np.cos(np.pi - m), np.sin(np.pi - m) * m
    xn = x / jnp.maximum(jnp.linalg.norm(x, axis=1, keepdims=True), 1e-12)
    wn = weight / jnp.maximum(
        jnp.linalg.norm(weight, axis=1, keepdims=True), 1e-12)
    cosine = jnp.dot(xn, wn.T, precision=lax.Precision.HIGHEST)
    sine = jnp.sqrt(jnp.clip(1.0 - cosine ** 2, 0.0, 1.0))
    phi = cosine * cos_m - sine * sin_m
    phi = jnp.where(cosine > th, phi, cosine - mm)
    one_hot = jax.nn.one_hot(label, weight.shape[0], dtype=jnp.float32)
    return (one_hot * phi + (1.0 - one_hot) * cosine) * s


if __name__ == "__main__":
    # Small, module-consistent shapes: batch=8, in_features=32, out_features=250
    # (deliberately NOT a multiple of 128 to exercise the padding path).
    B, in_features, out_features = 8, 32, 250
    s_param, m_param = 64.0, 0.9

    key = jax.random.PRNGKey(0)
    kx, kw, kl = jax.random.split(key, 3)

    x = jax.random.normal(kx, (B, in_features), dtype=jnp.float32)

    # Deterministic xavier_uniform_-style init for weight (out_features, in_features)
    bound = float(np.sqrt(6.0 / (in_features + out_features)))
    weight = jax.random.uniform(
        kw, (out_features, in_features), dtype=jnp.float32,
        minval=-bound, maxval=bound)

    label = jax.random.randint(kl, (B,), 0, out_features, dtype=jnp.int32)

    # f32 path
    out = jax.block_until_ready(
        arc_margin_forward(x, weight, label, s=s_param, m=m_param))
    ref = _reference(x, weight, label, s=s_param, m=m_param)
    assert out.shape == (B, out_features)
    assert bool(jnp.allclose(out, ref, atol=5e-2, rtol=1e-2)), "f32 mismatch vs reference"

    # bf16-weight streaming path (native-dtype stream); compare against a
    # reference that sees the same bf16-rounded weights.
    w_bf16 = weight.astype(jnp.bfloat16)
    out_bf16 = jax.block_until_ready(
        arc_margin_forward(x, w_bf16, label, s=s_param, m=m_param))
    ref_bf16 = _reference(x, w_bf16.astype(jnp.float32), label, s=s_param, m=m_param)
    assert out_bf16.shape == (B, out_features)
    assert bool(jnp.allclose(out_bf16, ref_bf16, atol=0.6, rtol=5e-2)), "bf16 path mismatch"

    print("KERNEL_OK")
</pallas_src>

<mosaic_0001>
module attributes {stable_mosaic.version = 11 : i64} {
  func.func @_arc_margin_kernel(%arg0: i32, %arg1: memref<8x1xi32, #tpu.memory_space<vmem>>, %arg2: memref<8x32xf32, #tpu.memory_space<vmem>>, %arg3: memref<256x32xf32, #tpu.memory_space<vmem>>, %arg4: memref<8x256xf32, #tpu.memory_space<vmem>>) attributes {dimension_semantics = [#tpu.dimension_semantics<parallel>], iteration_bounds = array<i64: 1>, scalar_prefetch = 0 : i64, scratch_operands = 0 : i64, tpu.core_type = #tpu.core_type<tc>, window_params = [{pipeline_mode = #tpu.pipeline_mode<synchronous>, transform_indices = @transform_0, window_bounds = array<i64: 8, 1>}, {pipeline_mode = #tpu.pipeline_mode<synchronous>, transform_indices = @transform_1, window_bounds = array<i64: 8, 32>}, {transform_indices = @transform_2, window_bounds = array<i64: 256, 32>}, {transform_indices = @transform_3, window_bounds = array<i64: 8, 256>}]} {
    %c0 = arith.constant 0 : index
    %c0_0 = arith.constant 0 : index
    %0 = vector.load %arg3[%c0, %c0_0] : memref<256x32xf32, #tpu.memory_space<vmem>>, vector<256x32xf32>
    %1 = arith.mulf %0, %0 : vector<256x32xf32>
    %cst = arith.constant dense<0.000000e+00> : vector<256xf32>
    %2 = vector.multi_reduction <add>, %1, %cst [1] : vector<256x32xf32> to vector<256xf32>
    %3 = vector.shape_cast %2 : vector<256xf32> to vector<256x1xf32>
    %cst_1 = arith.constant 1.000000e-24 : f32
    %4 = vector.broadcast %cst_1 : f32 to vector<256x1xf32>
    %5 = arith.maximumf %3, %4 : vector<256x1xf32>
    %6 = math.rsqrt %5 : vector<256x1xf32>
    %7 = vector.broadcast %6 : vector<256x1xf32> to vector<256x32xf32>
    %8 = arith.mulf %0, %7 : vector<256x32xf32>
    %c0_2 = arith.constant 0 : index
    %c0_3 = arith.constant 0 : index
    %9 = vector.load %arg2[%c0_2, %c0_3] : memref<8x32xf32, #tpu.memory_space<vmem>>, vector<8x32xf32>
    %cst_4 = arith.constant dense<0.000000e+00> : vector<8x256xf32>
    %10 = tpu.matmul %9, %8, %cst_4 {dimension_numbers = #tpu.dot_dimension_numbers<[1], [1], [0], [0], [0, 0, 1, 0], [], []>} : vector<8x32xf32>, vector<256x32xf32>, vector<8x256xf32> -> vector<8x256xf32>
    %11 = arith.mulf %10, %10 : vector<8x256xf32>
    %cst_5 = arith.constant 1.000000e+00 : f32
    %12 = vector.broadcast %cst_5 : f32 to vector<8x256xf32>
    %13 = arith.subf %12, %11 : vector<8x256xf32>
    %cst_6 = arith.constant 0.000000e+00 : f32
    %cst_7 = arith.constant 1.000000e+00 : f32
    %14 = vector.broadcast %cst_6 : f32 to vector<8x256xf32>
    %15 = arith.maximumf %14, %13 : vector<8x256xf32>
    %16 = vector.broadcast %cst_7 : f32 to vector<8x256xf32>
    %17 = arith.minimumf %16, %15 : vector<8x256xf32>
    %18 = math.sqrt %17 : vector<8x256xf32>
    %cst_8 = arith.constant 0.621609985 : f32
    %19 = vector.broadcast %cst_8 : f32 to vector<8x256xf32>
    %20 = arith.mulf %10, %19 : vector<8x256xf32>
    %cst_9 = arith.constant 0.783326923 : f32
    %21 = vector.broadcast %cst_9 : f32 to vector<8x256xf32>
    %22 = arith.mulf %18, %21 : vector<8x256xf32>
    %23 = arith.subf %20, %22 : vector<8x256xf32>
    %cst_10 = arith.constant -0.621609985 : f32
    %24 = vector.broadcast %cst_10 : f32 to vector<8x256xf32>
    %25 = arith.cmpf ogt, %10, %24 : vector<8x256xf32>
    %cst_11 = arith.constant 0.704994202 : f32
    %26 = vector.broadcast %cst_11 : f32 to vector<8x256xf32>
    %27 = arith.subf %10, %26 : vector<8x256xf32>
    %28 = arith.select %25, %23, %27 : vector<8x256xi1>, vector<8x256xf32>
    %c256_i32 = arith.constant 256 : i32
    %29 = arith.muli %arg0, %c256_i32 : i32
    %30 = tpu.iota {dimensions = array<i32: 1>} : vector<8x256xi32>
    %31 = vector.broadcast %29 : i32 to vector<8x256xi32>
    %32 = arith.addi %31, %30 : vector<8x256xi32>
    %c0_12 = arith.constant 0 : index
    %c0_13 = arith.constant 0 : index
    %33 = vector.load %arg1[%c0_12, %c0_13] : memref<8x1xi32, #tpu.memory_space<vmem>>, vector<8x1xi32>
    %34 = vector.broadcast %33 : vector<8x1xi32> to vector<8x256xi32>
    %35 = arith.cmpi eq, %32, %34 : vector<8x256xi32>
    %36 = arith.select %35, %28, %10 : vector<8x256xi1>, vector<8x256xf32>
    %cst_14 = arith.constant 6.400000e+01 : f32
    %37 = vector.broadcast %cst_14 : f32 to vector<8x256xf32>
    %38 = arith.mulf %36, %37 : vector<8x256xf32>
    %c0_15 = arith.constant 0 : index
    %c0_16 = arith.constant 0 : index
    %39 = vector.load %arg4[%c0_15, %c0_16] : memref<8x256xf32, #tpu.memory_space<vmem>>, vector<8x256xf32>
    tpu.vector_store %arg4[%c0_15, %c0_16], %38 {strides = array<i32>} : memref<8x256xf32, #tpu.memory_space<vmem>>, vector<8x256xf32>,
    return
  }
  func.func @transform_0(%arg0: i32) -> (i32, i32) {
    %c0_i32 = arith.constant 0 : i32
    %c0_i32_0 = arith.constant 0 : i32
    %c0_i32_1 = arith.constant 0 : i32
    return %c0_i32, %c0_i32_0 : i32, i32
  }
  func.func @transform_1(%arg0: i32) -> (i32, i32) {
    %c0_i32 = arith.constant 0 : i32
    %c0_i32_0 = arith.constant 0 : i32
    %c0_i32_1 = arith.constant 0 : i32
    return %c0_i32, %c0_i32_0 : i32, i32
  }
  func.func @transform_2(%arg0: i32) -> (i32, i32) {
    %c0_i32 = arith.constant 0 : i32
    %c0_i32_0 = arith.constant 0 : i32
    return %arg0, %c0_i32 : i32, i32
  }
  func.func @transform_3(%arg0: i32) -> (i32, i32) {
    %c0_i32 = arith.constant 0 : i32
    %c0_i32_0 = arith.constant 0 : i32
    return %c0_i32, %arg0 : i32, i32
  }
}

</mosaic_0001>

<llo_original>
// kernel: tpu_custom_call.1
$region0: #{tpu_custom_call.1}
  #allocation0 [shape = 'u32[]', space=smem, size = 0x4, offset = 0x4, fixed_abs, tag = 'smem constant byte address 0x4 - core index']
  #allocation1 [shape = 'u32[144,128]{1,0:T(1,128)}', space=vmem, size = 0x12000, scoped, tag = 'internal scratch']
  %s0 = inlined_call_operand.vmem [shape: s32[8,1], index: 0, kind: input, shape index: {}]
  %s1 = inlined_call_operand.vmem [shape: f32[8,32], index: 1, kind: input, shape index: {}]
  %s2 = inlined_call_operand.vmem [shape: f32[256,32], index: 2, kind: input, shape index: {}]
  %s3 = inlined_call_operand.hbm [shape: f32[8,256], index: 3, kind: output, shape index: {}]
  %s4 = sld [smem:[#allocation0]]
  $region22: #{tpu_custom_call.1} parent=0
    _
  %s6 = ssub.s32 1, %s4
  %s7 = scalar_select 0, %s6, %s4
  $region1: #{tpu_custom_call.1} parent=0
    #allocation2 [shape = 'u8[8192]{0}', space=vmem, size = 0x2000, scoped, tag = 'output window, operand 0, single buffered']
    #allocation3 [shape = 's32[1]{0}', space=sflag, size = 0x4, scoped, tag = 'scoped memory for tpu_custom_call.1']
    %8 = vsyncpa [#allocation3], 0
    // Predicated region
    $region2: #{tpu_custom_call.1} parent=1 // pred_check
      _
    $region3: #{tpu_custom_call.1} parent=1 // pred_check_branch
      %10 = sbr.rel (0) target = $region5
    $region4: #{tpu_custom_call.1} parent=1 // pred_region
      _
    $region5: #{tpu_custom_call.1} parent=1 // pred_fallthru
      _
    // Predicated region
    $region6: #{tpu_custom_call.1} parent=1 // pred_check
      _
    $region7: #{tpu_custom_call.1} parent=1 // pred_check_branch
      %12 = sbr.rel (0) target = $region9
    $region8: #{tpu_custom_call.1} parent=1 // pred_region
      _
    $region9: #{tpu_custom_call.1} parent=1 // pred_fallthru
      _
    // Predicated region
    $region10: #{tpu_custom_call.1} parent=1 // pred_check
      _
    $region11: #{tpu_custom_call.1} parent=1 // pred_check_branch
      %14 = sbr.rel (0) target = $region13
    $region12: #{tpu_custom_call.1} parent=1 // pred_region
      _
    $region13: #{tpu_custom_call.1} parent=1 // pred_fallthru
      _
    %v15 = vld [vmem:[%s2] sm:$0xff]
    %v16 = vld [vmem:[%s2 + $0x8] sm:$0xff]
    %v17 = vld [vmem:[%s2 + $0x10] sm:$0xff]
    %v18 = vld [vmem:[%s2 + $0x18] sm:$0xff]
    %v19 = vld [vmem:[%s2 + $0x20] sm:$0xff]
    %v20 = vld [vmem:[%s2 + $0x28] sm:$0xff]
    %v21 = vld [vmem:[%s2 + $0x30] sm:$0xff]
    %v22 = vld [vmem:[%s2 + $0x38] sm:$0xff]
    %v23 = vld [vmem:[%s2 + $0x40] sm:$0xff]
    %v24 = vld [vmem:[%s2 + $0x48] sm:$0xff]
    %v25 = vld [vmem:[%s2 + $0x50] sm:$0xff]
    %v26 = vld [vmem:[%s2 + $0x58] sm:$0xff]
    %v27 = vld [vmem:[%s2 + $0x60] sm:$0xff]
    %v28 = vld [vmem:[%s2 + $0x68] sm:$0xff]
    %v29 = vld [vmem:[%s2 + $0x70] sm:$0xff]
    %v30 = vld [vmem:[%s2 + $0x78] sm:$0xff]
    %v31 = vld [vmem:[%s2 + $0x80] sm:$0xff]
    %v32 = vld [vmem:[%s2 + $0x88] sm:$0xff]
    %v33 = vld [vmem:[%s2 + $0x90] sm:$0xff]
    %v34 = vld [vmem:[%s2 + $0x98] sm:$0xff]
    %v35 = vld [vmem:[%s2 + $0xa0] sm:$0xff]
    %v36 = vld [vmem:[%s2 + $0xa8] sm:$0xff]
    %v37 = vld [vmem:[%s2 + $0xb0] sm:$0xff]
    %v38 = vld [vmem:[%s2 + $0xb8] sm:$0xff]
    %v39 = vld [vmem:[%s2 + $0xc0] sm:$0xff]
    %v40 = vld [vmem:[%s2 + $0xc8] sm:$0xff]
    %v41 = vld [vmem:[%s2 + $0xd0] sm:$0xff]
    %v42 = vld [vmem:[%s2 + $0xd8] sm:$0xff]
    %v43 = vld [vmem:[%s2 + $0xe0] sm:$0xff]
    %v44 = vld [vmem:[%s2 + $0xe8] sm:$0xff]
    %v45 = vld [vmem:[%s2 + $0xf0] sm:$0xff]
    %v46 = vld [vmem:[%s2 + $0xf8] sm:$0xff]
    %v47 = vmul.f32 %v15, %v15
    %v48 = vmul.f32 %v16, %v16
    %v49 = vmul.f32 %v17, %v17
    %v50 = vmul.f32 %v18, %v18
    %v51 = vmul.f32 %v19, %v19
    %v52 = vmul.f32 %v20, %v20
    %v53 = vmul.f32 %v21, %v21
    %v54 = vmul.f32 %v22, %v22
    %v55 = vmul.f32 %v23, %v23
    %v56 = vmul.f32 %v24, %v24
    %v57 = vmul.f32 %v25, %v25
    %v58 = vmul.f32 %v26, %v26
    %v59 = vmul.f32 %v27, %v27
    %v60 = vmul.f32 %v28, %v28
    %v61 = vmul.f32 %v29, %v29
    %v62 = vmul.f32 %v30, %v30
    %v63 = vmul.f32 %v31, %v31
    %v64 = vmul.f32 %v32, %v32
    %v65 = vmul.f32 %v33, %v33
    %v66 = vmul.f32 %v34, %v34
    %v67 = vmul.f32 %v35, %v35
    %v68 = vmul.f32 %v36, %v36
    %v69 = vmul.f32 %v37, %v37
    %v70 = vmul.f32 %v38, %v38
    %v71 = vmul.f32 %v39, %v39
    %v72 = vmul.f32 %v40, %v40
    %v73 = vmul.f32 %v41, %v41
    %v74 = vmul.f32 %v42, %v42
    %v75 = vmul.f32 %v43, %v43
    %v76 = vmul.f32 %v44, %v44
    %v77 = vmul.f32 %v45, %v45
    %v78 = vmul.f32 %v46, %v46
    %vm79 = vcmask 261120
    %v80 = vsel %vm79, %v47, 0.0
    %81 = vadd.xlane.f32.xlu0 %v80
    %v82 = vpop.xlane.xlu0 %81
    %v83 = vsel %vm79, %v48, 0.0
    %84 = vadd.xlane.f32.xlu0 %v83
    %v85 = vpop.xlane.xlu0 %84
    %v86 = vsel %vm79, %v49, 0.0
    %87 = vadd.xlane.f32.xlu0 %v86
    %v88 = vpop.xlane.xlu0 %87
    %v89 = vsel %vm79, %v50, 0.0
    %90 = vadd.xlane.f32.xlu0 %v89
    %v91 = vpop.xlane.xlu0 %90
    %v92 = vsel %vm79, %v51, 0.0
    %93 = vadd.xlane.f32.xlu0 %v92
    %v94 = vpop.xlane.xlu0 %93
    %v95 = vsel %vm79, %v52, 0.0
    %96 = vadd.xlane.f32.xlu0 %v95
    %v97 = vpop.xlane.xlu0 %96
    %v98 = vsel %vm79, %v53, 0.0
    %99 = vadd.xlane.f32.xlu0 %v98
    %v100 = vpop.xlane.xlu0 %99
    %v101 = vsel %vm79, %v54, 0.0
    %102 = vadd.xlane.f32.xlu0 %v101
    %v103 = vpop.xlane.xlu0 %102
    %v104 = vsel %vm79, %v55, 0.0
    %105 = vadd.xlane.f32.xlu0 %v104
    %v106 = vpop.xlane.xlu0 %105
    %v107 = vsel %vm79, %v56, 0.0
    %108 = vadd.xlane.f32.xlu0 %v107
    %v109 = vpop.xlane.xlu0 %108
    %v110 = vsel %vm79, %v57, 0.0
    %111 = vadd.xlane.f32.xlu0 %v110
    %v112 = vpop.xlane.xlu0 %111
    %v113 = vsel %vm79, %v58, 0.0
    %114 = vadd.xlane.f32.xlu0 %v113
    %v115 = vpop.xlane.xlu0 %114
    %v116 = vsel %vm79, %v59, 0.0
    %117 = vadd.xlane.f32.xlu0 %v116
    %v118 = vpop.xlane.xlu0 %117
    %v119 = vsel %vm79, %v60, 0.0
    %120 = vadd.xlane.f32.xlu0 %v119
    %v121 = vpop.xlane.xlu0 %120
    %v122 = vsel %vm79, %v61, 0.0
    %123 = vadd.xlane.f32.xlu0 %v122
    %v124 = vpop.xlane.xlu0 %123
    %v125 = vsel %vm79, %v62, 0.0
    %126 = vadd.xlane.f32.xlu0 %v125
    %v127 = vpop.xlane.xlu0 %126
    %v128 = vsel %vm79, %v63, 0.0
    %129 = vadd.xlane.f32.xlu0 %v128
    %v130 = vpop.xlane.xlu0 %129
    %v131 = vsel %vm79, %v64, 0.0
    %132 = vadd.xlane.f32.xlu0 %v131
    %v133 = vpop.xlane.xlu0 %132
    %v134 = vsel %vm79, %v65, 0.0
    %135 = vadd.xlane.f32.xlu0 %v134
    %v136 = vpop.xlane.xlu0 %135
    %v137 = vsel %vm79, %v66, 0.0
    %138 = vadd.xlane.f32.xlu0 %v137
    %v139 = vpop.xlane.xlu0 %138
    %v140 = vsel %vm79, %v67, 0.0
    %141 = vadd.xlane.f32.xlu0 %v140
    %v142 = vpop.xlane.xlu0 %141
    %v143 = vsel %vm79, %v68, 0.0
    %144 = vadd.xlane.f32.xlu0 %v143
    %v145 = vpop.xlane.xlu0 %144
    %v146 = vsel %vm79, %v69, 0.0
    %147 = vadd.xlane.f32.xlu0 %v146
    %v148 = vpop.xlane.xlu0 %147
    %v149 = vsel %vm79, %v70, 0.0
    %150 = vadd.xlane.f32.xlu0 %v149
    %v151 = vpop.xlane.xlu0 %150
    %v152 = vsel %vm79, %v71, 0.0
    %153 = vadd.xlane.f32.xlu0 %v152
    %v154 = vpop.xlane.xlu0 %153
    %v155 = vsel %vm79, %v72, 0.0
    %156 = vadd.xlane.f32.xlu0 %v155
    %v157 = vpop.xlane.xlu0 %156
    %v158 = vsel %vm79, %v73, 0.0
    %159 = vadd.xlane.f32.xlu0 %v158
    %v160 = vpop.xlane.xlu0 %159
    %v161 = vsel %vm79, %v74, 0.0
    %162 = vadd.xlane.f32.xlu0 %v161
    %v163 = vpop.xlane.xlu0 %162
    %v164 = vsel %vm79, %v75, 0.0
    %165 = vadd.xlane.f32.xlu0 %v164
    %v166 = vpop.xlane.xlu0 %165
    %v167 = vsel %vm79, %v76, 0.0
    %168 = vadd.xlane.f32.xlu0 %v167
    %v169 = vpop.xlane.xlu0 %168
    %v170 = vsel %vm79, %v77, 0.0
    %171 = vadd.xlane.f32.xlu0 %v170
    %v172 = vpop.xlane.xlu0 %171
    %v173 = vsel %vm79, %v78, 0.0
    %174 = vadd.xlane.f32.xlu0 %v173
    %v175 = vpop.xlane.xlu0 %174
    %v176 = vmax.f32 %v82, 1e-24
    %v177 = vmax.f32 %v85, 1e-24
    %v178 = vmax.f32 %v88, 1e-24
    %v179 = vmax.f32 %v91, 1e-24
    %v180 = vmax.f32 %v94, 1e-24
    %v181 = vmax.f32 %v97, 1e-24
    %v182 = vmax.f32 %v100, 1e-24
    %v183 = vmax.f32 %v103, 1e-24
    %v184 = vmax.f32 %v106, 1e-24
    %v185 = vmax.f32 %v109, 1e-24
    %v186 = vmax.f32 %v112, 1e-24
    %v187 = vmax.f32 %v115, 1e-24
    %v188 = vmax.f32 %v118, 1e-24
    %v189 = vmax.f32 %v121, 1e-24
    %v190 = vmax.f32 %v124, 1e-24
    %v191 = vmax.f32 %v127, 1e-24
    %v192 = vmax.f32 %v130, 1e-24
    %v193 = vmax.f32 %v133, 1e-24
    %v194 = vmax.f32 %v136, 1e-24
    %v195 = vmax.f32 %v139, 1e-24
    %v196 = vmax.f32 %v142, 1e-24
    %v197 = vmax.f32 %v145, 1e-24
    %v198 = vmax.f32 %v148, 1e-24
    %v199 = vmax.f32 %v151, 1e-24
    %v200 = vmax.f32 %v154, 1e-24
    %v201 = vmax.f32 %v157, 1e-24
    %v202 = vmax.f32 %v160, 1e-24
    %v203 = vmax.f32 %v163, 1e-24
    %v204 = vmax.f32 %v166, 1e-24
    %v205 = vmax.f32 %v169, 1e-24
    %v206 = vmax.f32 %v172, 1e-24
    %v207 = vmax.f32 %v175, 1e-24
    %v208 = vrsqrt.pop %v176
    %v209 = vrsqrt.pop %v177
    %v210 = vrsqrt.pop %v178
    %v211 = vrsqrt.pop %v179
    %v212 = vrsqrt.pop %v180
    %v213 = vrsqrt.pop %v181
    %v214 = vrsqrt.pop %v182
    %v215 = vrsqrt.pop %v183
    %v216 = vrsqrt.pop %v184
    %v217 = vrsqrt.pop %v185
    %v218 = vrsqrt.pop %v186
    %v219 = vrsqrt.pop %v187
    %v220 = vrsqrt.pop %v188
    %v221 = vrsqrt.pop %v189
    %v222 = vrsqrt.pop %v190
    %v223 = vrsqrt.pop %v191
    %v224 = vrsqrt.pop %v192
    %v225 = vrsqrt.pop %v193
    %v226 = vrsqrt.pop %v194
    %v227 = vrsqrt.pop %v195
    %v228 = vrsqrt.pop %v196
    %v229 = vrsqrt.pop %v197
    %v230 = vrsqrt.pop %v198
    %v231 = vrsqrt.pop %v199
    %v232 = vrsqrt.pop %v200
    %v233 = vrsqrt.pop %v201
    %v234 = vrsqrt.pop %v202
    %v235 = vrsqrt.pop %v203
    %v236 = vrsqrt.pop %v204
    %v237 = vrsqrt.pop %v205
    %v238 = vrsqrt.pop %v206
    %v239 = vrsqrt.pop %v207
    %v240 = vmul.f32 %v15, %v208
    %v241 = vmul.f32 %v16, %v209
    %v242 = vmul.f32 %v17, %v210
    %v243 = vmul.f32 %v18, %v211
    %v244 = vmul.f32 %v19, %v212
    %v245 = vmul.f32 %v20, %v213
    %v246 = vmul.f32 %v21, %v214
    %v247 = vmul.f32 %v22, %v215
    %v248 = vmul.f32 %v23, %v216
    %v249 = vmul.f32 %v24, %v217
    %v250 = vmul.f32 %v25, %v218
    %v251 = vmul.f32 %v26, %v219
    %v252 = vmul.f32 %v27, %v220
    %v253 = vmul.f32 %v28, %v221
    %v254 = vmul.f32 %v29, %v222
    %v255 = vmul.f32 %v30, %v223
    %v256 = vmul.f32 %v31, %v224
    %v257 = vmul.f32 %v32, %v225
    %v258 = vmul.f32 %v33, %v226
    %v259 = vmul.f32 %v34, %v227
    %v260 = vmul.f32 %v35, %v228
    %v261 = vmul.f32 %v36, %v229
    %v262 = vmul.f32 %v37, %v230
    %v263 = vmul.f32 %v38, %v231
    %v264 = vmul.f32 %v39, %v232
    %v265 = vmul.f32 %v40, %v233
    %v266 = vmul.f32 %v41, %v234
    %v267 = vmul.f32 %v42, %v235
    %v268 = vmul.f32 %v43, %v236
    %v269 = vmul.f32 %v44, %v237
    %v270 = vmul.f32 %v45, %v238
    %v271 = vmul.f32 %v46, %v239
    %v272 = vld [vmem:[%s1] sm:$0xff]
    %v274 = vsel %vm79, %v272, 0
    %v277 = vsel %vm79, %v240, 0
    %v280 = vsel %vm79, %v241, 0
    %v283 = vsel %vm79, %v242, 0
    %v286 = vsel %vm79, %v243, 0
    %v289 = vsel %vm79, %v244, 0
    %v292 = vsel %vm79, %v245, 0
    %v295 = vsel %vm79, %v246, 0
    %v298 = vsel %vm79, %v247, 0
    %v301 = vsel %vm79, %v248, 0
    %v304 = vsel %vm79, %v249, 0
    %v307 = vsel %vm79, %v250, 0
    %v310 = vsel %vm79, %v251, 0
    %v313 = vsel %vm79, %v252, 0
    %v316 = vsel %vm79, %v253, 0
    %v319 = vsel %vm79, %v254, 0
    %v322 = vsel %vm79, %v255, 0
    %v325 = vsel %vm79, %v256, 0
    %v328 = vsel %vm79, %v257, 0
    %v331 = vsel %vm79, %v258, 0
    %v334 = vsel %vm79, %v259, 0
    %v337 = vsel %vm79, %v260, 0
    %v340 = vsel %vm79, %v261, 0
    %v343 = vsel %vm79, %v262, 0
    %v346 = vsel %vm79, %v263, 0
    %v349 = vsel %vm79, %v264, 0
    %v352 = vsel %vm79, %v265, 0
    %v355 = vsel %vm79, %v266, 0
    %v358 = vsel %vm79, %v267, 0
    %v361 = vsel %vm79, %v268, 0
    %v364 = vsel %vm79, %v269, 0
    %v367 = vsel %vm79, %v270, 0
    %v370 = vsel %vm79, %v271, 0
    %372 = vmatprep.subr.mxu0 0.0
    %373 = vmatpush1.xpose.msra.mxu0 %v277
    %374 = vmatprep.subr.mxu0 0.0
    %375 = vmatpush1.xpose.msra.mxu0 %v280
    %376 = vmatprep.subr.mxu0 0.0
    %377 = vmatpush1.xpose.msra.mxu0 %v283
    %378 = vmatprep.subr.mxu0 0.0
    %379 = vmatpush1.xpose.msra.mxu0 %v286
    %380 = vmatprep.subr.mxu0 0.0
    %381 = vmatpush1.xpose.msra.mxu0 %v289
    %382 = vmatprep.subr.mxu0 0.0
    %383 = vmatpush1.xpose.msra.mxu0 %v292
    %384 = vmatprep.subr.mxu0 0.0
    %385 = vmatpush1.xpose.msra.mxu0 %v295
    %386 = vmatprep.subr.mxu0 0.0
    %387 = vmatpush1.xpose.msra.mxu0 %v298
    %388 = vmatprep.subr.mxu0 0.0
    %389 = vmatpush1.xpose.msra.mxu0 %v301
    %390 = vmatprep.subr.mxu0 0.0
    %391 = vmatpush1.xpose.msra.mxu0 %v304
    %392 = vmatprep.subr.mxu0 0.0
    %393 = vmatpush1.xpose.msra.mxu0 %v307
    %394 = vmatprep.subr.mxu0 0.0
    %395 = vmatpush1.xpose.msra.mxu0 %v310
    %396 = vmatprep.subr.mxu0 0.0
    %397 = vmatpush1.xpose.msra.mxu0 %v313
    %398 = vmatprep.subr.mxu0 0.0
    %399 = vmatpush1.xpose.msra.mxu0 %v316
    %400 = vmatprep.subr.mxu0 0.0
    %401 = vmatpush1.xpose.msra.mxu0 %v319
    %402 = vmatprep.subr.mxu0 0.0
    %403 = vmatpush1.xpose.msra.mxu0 %v322
    %404 = vmatprep.subr.mxu0 0.0
    %405 = vmatpush1.xpose.msra.mxu0 %v325
    %406 = vmatprep.subr.mxu0 0.0
    %407 = vmatpush1.xpose.msra.mxu0 %v328
    %408 = vmatprep.subr.mxu0 0.0
    %409 = vmatpush1.xpose.msra.mxu0 %v331
    %410 = vmatprep.subr.mxu0 0.0
    %411 = vmatpush1.xpose.msra.mxu0 %v334
    %412 = vmatprep.subr.mxu0 0.0
    %413 = vmatpush1.xpose.msra.mxu0 %v337
    %414 = vmatprep.subr.mxu0 0.0
    %415 = vmatpush1.xpose.msra.mxu0 %v340
    %416 = vmatprep.subr.mxu0 0.0
    %417 = vmatpush1.xpose.msra.mxu0 %v343
    %418 = vmatprep.subr.mxu0 0.0
    %419 = vmatpush1.xpose.msra.mxu0 %v346
    %420 = vmatprep.subr.mxu0 0.0
    %421 = vmatpush1.xpose.msra.mxu0 %v349
    %422 = vmatprep.subr.mxu0 0.0
    %423 = vmatpush1.xpose.msra.mxu0 %v352
    %424 = vmatprep.subr.mxu0 0.0
    %425 = vmatpush1.xpose.msra.mxu0 %v355
    %426 = vmatprep.subr.mxu0 0.0
    %427 = vmatpush1.xpose.msra.mxu0 %v358
    %428 = vmatprep.subr.mxu0 0.0
    %429 = vmatpush1.xpose.msra.mxu0 %v361
    %430 = vmatprep.subr.mxu0 0.0
    %431 = vmatpush1.xpose.msra.mxu0 %v364
    %432 = vmatprep.subr.mxu0 0.0
    %433 = vmatpush1.xpose.msra.mxu0 %v367
    %434 = vmatprep.subr.mxu0 0.0
    %435 = vmatpush1.xpose.msra.mxu0 %v370
    %436 = vmatprep.mubr.f32.mxu0 0.0
    %437 = vmatmul.mubr.f32.gmra.mrb[0].mxu0 %v274
    %v438 = vpop.f32.mrb[0].mxu0
    %v439 = vadd.f32 0.0, %v438
    %v440 = vpop.f32.mrb[0].mxu0
    %v441 = vadd.f32 0.0, %v440
    %442 = vdwg.mxu0
    %v443 = vmul.f32 %v439, %v439
    %v444 = vmul.f32 %v441, %v441
    %v445 = vsub.f32 1.0, %v443
    %v446 = vsub.f32 1.0, %v444
    %v447 = vmax.f32 %v445, 0.0
    %v448 = vmax.f32 %v446, 0.0
    %v449 = vmin.f32 %v447, 1.0
    %v450 = vmin.f32 %v448, 1.0
    %v451 = vrsqrt.pop %v449
    %v452 = vmul.f32 %v449, %v451
    %vm453 = vcmp.eq.f32.partialorder %v449, inf
    %v454 = vsel %vm453, %v449, %v452
    %vm455 = vcmp.eq.f32.partialorder %v449, 0.0
    %v456 = vand.u32 %v449, 2147483648
    %v457 = vsel %vm455, %v456, %v454
    %v458 = vrsqrt.pop %v450
    %v459 = vmul.f32 %v450, %v458
    %vm460 = vcmp.eq.f32.partialorder %v450, inf
    %v461 = vsel %vm460, %v450, %v459
    %vm462 = vcmp.eq.f32.partialorder %v450, 0.0
    %v463 = vand.u32 %v450, 2147483648
    %v464 = vsel %vm462, %v463, %v461
    %v465 = vmul.f32 %v439, 0.62161
    %v466 = vmul.f32 %v441, 0.62161
    %v467 = vmul.f32 %v457, 0.7833269
    %v468 = vmul.f32 %v464, 0.7833269
    %v469 = vsub.f32 %v465, %v467
    %v470 = vsub.f32 %v466, %v468
    %vm471 = vcmp.gt.f32.partialorder %v439, -0.62161
    %vm472 = vcmp.gt.f32.partialorder %v441, -0.62161
    %v473 = vsub.f32 %v439, 0.7049942
    %v474 = vsub.f32 %v441, 0.7049942
    %v475 = vsel %vm471, %v469, %v473
    %v476 = vsel %vm472, %v470, %v474
    %s477 = smul.u32 0, 256
    %v478 = vlaneseq
    %v479 = vand.u32 %v478, 127
    %v480 = vadd.s32 %v479, 128
    %v481 = vstv %s477
    %v482 = vadd.s32 %v481, %v479
    %v483 = vadd.s32 %v481, %v480
    %v484 = vld [vmem:[%s0] sm:$0xff]
    %485 = vset.pattern.permute.xlu0 0
    %486 = vperm.xlu0 %485, %v484
    %v487 = vpop.permute.xlu0 %486
    %vm488 = vcmp.eq.s32.totalorder %v482, %v487
    %vm489 = vcmp.eq.s32.totalorder %v483, %v487
    %v490 = vsel %vm488, %v475, %v439
    %v491 = vsel %vm489, %v476, %v441
    %v492 = vmul.f32 %v490, 64.0
    %v493 = vmul.f32 %v491, 64.0
    %494 = vst [vmem:[#allocation2] sm:$0xff] %v492
    %495 = vst [vmem:[#allocation2 + $0x8] sm:$0xff] %v493
    // Predicated region
    $region14: #{tpu_custom_call.1} parent=1 // pred_check
      _
    $region15: #{tpu_custom_call.1} parent=1 // pred_check_branch
      %497 = sbr.rel (0) target = $region17
    $region16: #{tpu_custom_call.1} parent=1 // pred_region
      %s499 = ssub.s32 256, 256
      %500 = vsyncadd [#allocation3], %s499
      %s502 = sshll.u32 [#allocation2], 4
      %s503 = int_to_ptr.vmem [resolvable:$true] %s502
      %505 = dma.vmem_to_hbm [thread:$0]  %s503, 256, %s3, [#allocation3]
    $region17: #{tpu_custom_call.1} parent=1 // pred_fallthru
      _
    // Predicated region
    $region18: #{tpu_custom_call.1} parent=1 // pred_check
      _
    $region19: #{tpu_custom_call.1} parent=1 // pred_check_branch
      %507 = sbr.rel (0) target = $region21
    $region20: #{tpu_custom_call.1} parent=1 // pred_region
      %508 = dma.done [#allocation3], 256
    $region21: #{tpu_custom_call.1} parent=1 // pred_fallthru
      _
    %509 = vsyncpa [#allocation3], 1

</llo_original>
